<compile_context>
chip_gen: v6e
topology: v6e:2x2x1
jax: 0.10.0
libtpu: 0.0.40
codegen_flags: <defaults>
</compile_context>

<pallas_src>
import functools

import jax
import jax.numpy as jnp
from jax import lax
from jax.experimental import pallas as pl
from jax.experimental.pallas import tpu as pltpu


def _make_sam3a_kernel(N, D, use_residual):
    def kernel(f_ref, w_ref, kq_ref, out_ref):
        f = f_ref[...]                                   # (TB, N, D), native dtype
        tb = f.shape[0]
        in_dtype = f.dtype

        # Fused K/Q projection on the MXU: (TB*N, D) @ (D, PD) -> f32 accumulate.
        f2 = f.reshape(tb * N, D)
        proj = lax.dot_general(
            f2, kq_ref[...], (((1,), (0,)), ((), ())),
            preferred_element_type=jnp.float32)          # (TB*N, PD)
        proj = proj.reshape(tb, N, proj.shape[-1])       # (TB, N, PD)
        kf = proj[:, :, :D].astype(in_dtype)             # K(F), (TB, N, D)

        # S = bmm(F, K(F)^T): batched over TB, contracting D (MXU).
        s = lax.dot_general(
            f, kf, (((2,), (2,)), ((0,), (0,))),
            preferred_element_type=jnp.float32)          # (TB, N, N)
        s = s.astype(w_ref.dtype)

        # out[:, n, :] = S[:, n, :] @ W[n]  (+ Q(F)[:, n, :]) -- per-field MXU matmuls.
        for n in range(N):
            o_n = lax.dot_general(
                s[:, n, :], w_ref[n], (((1,), (0,)), ((), ())),
                preferred_element_type=jnp.float32)      # (TB, D)
            if use_residual:
                o_n = o_n + proj[:, n, D:]               # Q(F) residual (f32)
            out_ref[:, n, :] = o_n.astype(out_ref.dtype)

    return kernel


@functools.partial(jax.jit, static_argnames=("block_b",))
def sam3a(F, W, K_w, Q_w=None, *, block_b=256):
    """SAM3A forward.

    F:   (B, N, D)
    W:   (N, N, D)
    K_w: (D, D)  torch Linear weight for K  (K(F) = F @ K_w^T)
    Q_w: (D, D) or None  torch Linear weight for Q (residual path)
    Returns (B, N, D).  Dropout is p=0 -> identity.
    """
    B, N, D = F.shape
    use_residual = Q_w is not None

    # Fused, pre-transposed projection weight: F_flat @ kq -> [K(F) | Q(F)].
    if use_residual:
        kq = jnp.concatenate([K_w.T, Q_w.T], axis=1)     # (D, 2D)
    else:
        kq = K_w.T                                       # (D, D)
    PD = kq.shape[1]

    # Batch blocking + zero-padding so every block is full-size.
    TB = int(min(block_b, B))
    n_blocks = -(-B // TB)
    B_pad = n_blocks * TB
    F_in = F if B_pad == B else jnp.pad(F, ((0, B_pad - B), (0, 0), (0, 0)))

    itemsize = jnp.dtype(F.dtype).itemsize
    w_itemsize = jnp.dtype(W.dtype).itemsize
    flops = B_pad * (2 * N * D * PD        # fused K/Q projection
                     + 2 * N * N * D       # S
                     + 2 * N * N * D)      # S . W contraction
    bytes_accessed = (2 * B_pad * N * D * itemsize       # F in, out
                      + N * N * D * w_itemsize           # W (resident)
                      + D * PD * w_itemsize)             # fused K/Q weight

    # Rough per-step VMEM footprint: double-buffered F/out blocks, resident
    # (double-buffered) weights, f32 temporaries (proj, S, kf) + headroom.
    vmem_est = (4 * TB * N * D * itemsize
                + 2 * (N * N * D + D * PD) * w_itemsize
                + 4 * TB * N * (PD + N + 2 * D) * 4)
    vmem_limit = int(min(64 * 2**20, max(32 * 2**20, 2 * vmem_est)))

    out = pl.pallas_call(
        _make_sam3a_kernel(N, D, use_residual),
        out_shape=jax.ShapeDtypeStruct((B_pad, N, D), F.dtype),
        grid_spec=pltpu.PrefetchScalarGridSpec(
            num_scalar_prefetch=0,
            grid=(n_blocks,),
            in_specs=[
                pl.BlockSpec((TB, N, D), lambda b: (b, 0, 0)),   # F: streamed
                pl.BlockSpec((N, N, D), lambda b: (0, 0, 0)),    # W: resident
                pl.BlockSpec((D, PD), lambda b: (0, 0)),         # [K|Q]^T: resident
            ],
            out_specs=pl.BlockSpec((TB, N, D), lambda b: (b, 0, 0)),
        ),
        compiler_params=pltpu.CompilerParams(
            dimension_semantics=("parallel",),
            vmem_limit_bytes=vmem_limit,
        ),
        cost_estimate=pl.CostEstimate(
            flops=flops, transcendentals=0, bytes_accessed=bytes_accessed),
    )(F_in, W, kq)

    return out if B_pad == B else out[:B]


def sam3a_reference(F, W, K_w, Q_w=None):
    """Pure-JAX reference mirroring the PyTorch module (dropout=0)."""
    KF = jnp.einsum('bnd,ed->bne', F, K_w)        # F @ K_w^T
    S = jnp.einsum('bnd,bmd->bnm', F, KF)         # bmm(F, K(F)^T)
    out = jnp.einsum('bnm,nmd->bnd', S, W)        # (S[...,None] * W).sum(dim=2)
    if Q_w is not None:
        out = out + jnp.einsum('bnd,ed->bne', F, Q_w)
    return out


if __name__ == "__main__":
    # TODO(synk): dropout path not implemented (module default p=0 -> identity).
    B, N, D = 2, 8, 32
    key = jax.random.PRNGKey(0)
    k_f, k_w, k_k, k_q = jax.random.split(key, 4)

    F = jax.random.normal(k_f, (B, N, D), dtype=jnp.float32)
    # Module initializes W to ones; perturb slightly so the test exercises the
    # full per-(n,m,d) contraction rather than a degenerate all-ones weight.
    W = jnp.ones((N, N, D), jnp.float32) + 0.1 * jax.random.normal(
        k_w, (N, N, D), dtype=jnp.float32)
    K_w = jax.random.normal(k_k, (D, D), dtype=jnp.float32) / jnp.sqrt(D)
    Q_w = jax.random.normal(k_q, (D, D), dtype=jnp.float32) / jnp.sqrt(D)

    # Residual path.
    out = sam3a(F, W, K_w, Q_w)
    jax.block_until_ready(out)
    ref = sam3a_reference(F, W, K_w, Q_w)
    assert out.shape == (B, N, D), out.shape
    assert jnp.allclose(out, ref, rtol=1e-4, atol=1e-3), "mismatch vs reference"

    # No-residual path.
    out_nr = sam3a(F, W, K_w, None)
    jax.block_until_ready(out_nr)
    ref_nr = sam3a_reference(F, W, K_w, None)
    assert jnp.allclose(out_nr, ref_nr, rtol=1e-4, atol=1e-3), "mismatch (no residual)"

    # Exercise batch padding + multi-step parallel grid (B=5, TB=2 -> pad to 6).
    B2 = 5
    F2 = jax.random.normal(k_f, (B2, N, D), dtype=jnp.float32)
    out_p = sam3a(F2, W, K_w, Q_w, block_b=2)
    jax.block_until_ready(out_p)
    ref_p = sam3a_reference(F2, W, K_w, Q_w)
    assert out_p.shape == (B2, N, D), out_p.shape
    assert jnp.allclose(out_p, ref_p, rtol=1e-4, atol=1e-3), "mismatch (padded batch)"

    print("KERNEL_OK")
</pallas_src>

<mosaic_0001>
module attributes {stable_mosaic.version = 11 : i64} {
  func.func @kernel(%arg0: i32, %arg1: memref<2x8x32xf32, #tpu.memory_space<vmem>>, %arg2: memref<8x8x32xf32, #tpu.memory_space<vmem>>, %arg3: memref<32x64xf32, #tpu.memory_space<vmem>>, %arg4: memref<2x8x32xf32, #tpu.memory_space<vmem>>) attributes {dimension_semantics = [#tpu.dimension_semantics<parallel>], iteration_bounds = array<i64: 1>, scalar_prefetch = 0 : i64, scratch_operands = 0 : i64, tpu.core_type = #tpu.core_type<tc>, window_params = [{transform_indices = @transform_0, window_bounds = array<i64: 2, 8, 32>}, {pipeline_mode = #tpu.pipeline_mode<synchronous>, transform_indices = @transform_1, window_bounds = array<i64: 8, 8, 32>}, {pipeline_mode = #tpu.pipeline_mode<synchronous>, transform_indices = @transform_2, window_bounds = array<i64: 32, 64>}, {transform_indices = @transform_3, window_bounds = array<i64: 2, 8, 32>}]} {
    %c0 = arith.constant 0 : index
    %c0_0 = arith.constant 0 : index
    %c0_1 = arith.constant 0 : index
    %0 = vector.load %arg1[%c0, %c0_0, %c0_1] : memref<2x8x32xf32, #tpu.memory_space<vmem>>, vector<2x8x32xf32>
    %1 = vector.shape_cast %0 : vector<2x8x32xf32> to vector<16x32xf32>
    %c0_2 = arith.constant 0 : index
    %c0_3 = arith.constant 0 : index
    %2 = vector.load %arg3[%c0_2, %c0_3] : memref<32x64xf32, #tpu.memory_space<vmem>>, vector<32x64xf32>
    %cst = arith.constant dense<0.000000e+00> : vector<16x64xf32>
    %3 = tpu.matmul %1, %2, %cst {dimension_numbers = #tpu.dot_dimension_numbers<[1], [0], [0], [1], [0, 0, 1, 1], [], []>} : vector<16x32xf32>, vector<32x64xf32>, vector<16x64xf32> -> vector<16x64xf32>
    %4 = vector.shape_cast %3 : vector<16x64xf32> to vector<2x8x64xf32>
    %5 = vector.extract_strided_slice %4 {offsets = [0, 0, 0], sizes = [2, 8, 32], strides = [1, 1, 1]} : vector<2x8x64xf32> to vector<2x8x32xf32>
    %cst_4 = arith.constant dense<0.000000e+00> : vector<2x8x8xf32>
    %6 = tpu.matmul %0, %5, %cst_4 {dimension_numbers = #tpu.dot_dimension_numbers<[2], [2], [1], [1], [0, 0, 0, 1, 1, 1], [0], [0]>} : vector<2x8x32xf32>, vector<2x8x32xf32>, vector<2x8x8xf32> -> vector<2x8x8xf32>
    %7 = vector.extract_strided_slice %6 {offsets = [0, 0, 0], sizes = [2, 1, 8], strides = [1, 1, 1]} : vector<2x8x8xf32> to vector<2x1x8xf32>
    %8 = vector.shape_cast %7 : vector<2x1x8xf32> to vector<2x8xf32>
    %c0_5 = arith.constant 0 : index
    %c0_6 = arith.constant 0 : index
    %c0_7 = arith.constant 0 : index
    %9 = vector.load %arg2[%c0_5, %c0_6, %c0_7] : memref<8x8x32xf32, #tpu.memory_space<vmem>>, vector<1x8x32xf32>
    %10 = vector.shape_cast %9 : vector<1x8x32xf32> to vector<8x32xf32>
    %cst_8 = arith.constant dense<0.000000e+00> : vector<2x32xf32>
    %11 = tpu.matmul %8, %10, %cst_8 {dimension_numbers = #tpu.dot_dimension_numbers<[1], [0], [0], [1], [0, 0, 1, 1], [], []>} : vector<2x8xf32>, vector<8x32xf32>, vector<2x32xf32> -> vector<2x32xf32>
    %12 = vector.extract_strided_slice %4 {offsets = [0, 0, 32], sizes = [2, 1, 32], strides = [1, 1, 1]} : vector<2x8x64xf32> to vector<2x1x32xf32>
    %13 = vector.shape_cast %12 : vector<2x1x32xf32> to vector<2x32xf32>
    %14 = arith.addf %11, %13 : vector<2x32xf32>
    %c0_9 = arith.constant 0 : index
    %c0_10 = arith.constant 0 : index
    %c0_11 = arith.constant 0 : index
    %15 = vector.load %arg4[%c0_9, %c0_10, %c0_11] : memref<2x8x32xf32, #tpu.memory_space<vmem>>, vector<2x1x32xf32>
    %16 = vector.shape_cast %15 : vector<2x1x32xf32> to vector<2x32xf32>
    %17 = vector.shape_cast %14 : vector<2x32xf32> to vector<2x1x32xf32>
    tpu.vector_store %arg4[%c0_9, %c0_10, %c0_11], %17 {strides = array<i32>} : memref<2x8x32xf32, #tpu.memory_space<vmem>>, vector<2x1x32xf32>,
    %18 = vector.extract_strided_slice %6 {offsets = [0, 1, 0], sizes = [2, 1, 8], strides = [1, 1, 1]} : vector<2x8x8xf32> to vector<2x1x8xf32>
    %19 = vector.shape_cast %18 : vector<2x1x8xf32> to vector<2x8xf32>
    %c1 = arith.constant 1 : index
    %c0_12 = arith.constant 0 : index
    %c0_13 = arith.constant 0 : index
    %20 = vector.load %arg2[%c1, %c0_12, %c0_13] : memref<8x8x32xf32, #tpu.memory_space<vmem>>, vector<1x8x32xf32>
    %21 = vector.shape_cast %20 : vector<1x8x32xf32> to vector<8x32xf32>
    %cst_14 = arith.constant dense<0.000000e+00> : vector<2x32xf32>
    %22 = tpu.matmul %19, %21, %cst_14 {dimension_numbers = #tpu.dot_dimension_numbers<[1], [0], [0], [1], [0, 0, 1, 1], [], []>} : vector<2x8xf32>, vector<8x32xf32>, vector<2x32xf32> -> vector<2x32xf32>
    %23 = vector.extract_strided_slice %4 {offsets = [0, 1, 32], sizes = [2, 1, 32], strides = [1, 1, 1]} : vector<2x8x64xf32> to vector<2x1x32xf32>
    %24 = vector.shape_cast %23 : vector<2x1x32xf32> to vector<2x32xf32>
    %25 = arith.addf %22, %24 : vector<2x32xf32>
    %c0_15 = arith.constant 0 : index
    %c1_16 = arith.constant 1 : index
    %c0_17 = arith.constant 0 : index
    %26 = vector.load %arg4[%c0_15, %c1_16, %c0_17] : memref<2x8x32xf32, #tpu.memory_space<vmem>>, vector<2x1x32xf32>
    %27 = vector.shape_cast %26 : vector<2x1x32xf32> to vector<2x32xf32>
    %28 = vector.shape_cast %25 : vector<2x32xf32> to vector<2x1x32xf32>
    tpu.vector_store %arg4[%c0_15, %c1_16, %c0_17], %28 {strides = array<i32>} : memref<2x8x32xf32, #tpu.memory_space<vmem>>, vector<2x1x32xf32>,
    %29 = vector.extract_strided_slice %6 {offsets = [0, 2, 0], sizes = [2, 1, 8], strides = [1, 1, 1]} : vector<2x8x8xf32> to vector<2x1x8xf32>
    %30 = vector.shape_cast %29 : vector<2x1x8xf32> to vector<2x8xf32>
    %c2 = arith.constant 2 : index
    %c0_18 = arith.constant 0 : index
    %c0_19 = arith.constant 0 : index
    %31 = vector.load %arg2[%c2, %c0_18, %c0_19] : memref<8x8x32xf32, #tpu.memory_space<vmem>>, vector<1x8x32xf32>
    %32 = vector.shape_cast %31 : vector<1x8x32xf32> to vector<8x32xf32>
    %cst_20 = arith.constant dense<0.000000e+00> : vector<2x32xf32>
    %33 = tpu.matmul %30, %32, %cst_20 {dimension_numbers = #tpu.dot_dimension_numbers<[1], [0], [0], [1], [0, 0, 1, 1], [], []>} : vector<2x8xf32>, vector<8x32xf32>, vector<2x32xf32> -> vector<2x32xf32>
    %34 = vector.extract_strided_slice %4 {offsets = [0, 2, 32], sizes = [2, 1, 32], strides = [1, 1, 1]} : vector<2x8x64xf32> to vector<2x1x32xf32>
    %35 = vector.shape_cast %34 : vector<2x1x32xf32> to vector<2x32xf32>
    %36 = arith.addf %33, %35 : vector<2x32xf32>
    %c0_21 = arith.constant 0 : index
    %c2_22 = arith.constant 2 : index
    %c0_23 = arith.constant 0 : index
    %37 = vector.load %arg4[%c0_21, %c2_22, %c0_23] : memref<2x8x32xf32, #tpu.memory_space<vmem>>, vector<2x1x32xf32>
    %38 = vector.shape_cast %37 : vector<2x1x32xf32> to vector<2x32xf32>
    %39 = vector.shape_cast %36 : vector<2x32xf32> to vector<2x1x32xf32>
    tpu.vector_store %arg4[%c0_21, %c2_22, %c0_23], %39 {strides = array<i32>} : memref<2x8x32xf32, #tpu.memory_space<vmem>>, vector<2x1x32xf32>,
    %40 = vector.extract_strided_slice %6 {offsets = [0, 3, 0], sizes = [2, 1, 8], strides = [1, 1, 1]} : vector<2x8x8xf32> to vector<2x1x8xf32>
    %41 = vector.shape_cast %40 : vector<2x1x8xf32> to vector<2x8xf32>
    %c3 = arith.constant 3 : index
    %c0_24 = arith.constant 0 : index
    %c0_25 = arith.constant 0 : index
    %42 = vector.load %arg2[%c3, %c0_24, %c0_25] : memref<8x8x32xf32, #tpu.memory_space<vmem>>, vector<1x8x32xf32>
    %43 = vector.shape_cast %42 : vector<1x8x32xf32> to vector<8x32xf32>
    %cst_26 = arith.constant dense<0.000000e+00> : vector<2x32xf32>
    %44 = tpu.matmul %41, %43, %cst_26 {dimension_numbers = #tpu.dot_dimension_numbers<[1], [0], [0], [1], [0, 0, 1, 1], [], []>} : vector<2x8xf32>, vector<8x32xf32>, vector<2x32xf32> -> vector<2x32xf32>
    %45 = vector.extract_strided_slice %4 {offsets = [0, 3, 32], sizes = [2, 1, 32], strides = [1, 1, 1]} : vector<2x8x64xf32> to vector<2x1x32xf32>
    %46 = vector.shape_cast %45 : vector<2x1x32xf32> to vector<2x32xf32>
    %47 = arith.addf %44, %46 : vector<2x32xf32>
    %c0_27 = arith.constant 0 : index
    %c3_28 = arith.constant 3 : index
    %c0_29 = arith.constant 0 : index
    %48 = vector.load %arg4[%c0_27, %c3_28, %c0_29] : memref<2x8x32xf32, #tpu.memory_space<vmem>>, vector<2x1x32xf32>
    %49 = vector.shape_cast %48 : vector<2x1x32xf32> to vector<2x32xf32>
    %50 = vector.shape_cast %47 : vector<2x32xf32> to vector<2x1x32xf32>
    tpu.vector_store %arg4[%c0_27, %c3_28, %c0_29], %50 {strides = array<i32>} : memref<2x8x32xf32, #tpu.memory_space<vmem>>, vector<2x1x32xf32>,
    %51 = vector.extract_strided_slice %6 {offsets = [0, 4, 0], sizes = [2, 1, 8], strides = [1, 1, 1]} : vector<2x8x8xf32> to vector<2x1x8xf32>
    %52 = vector.shape_cast %51 : vector<2x1x8xf32> to vector<2x8xf32>
    %c4 = arith.constant 4 : index
    %c0_30 = arith.constant 0 : index
    %c0_31 = arith.constant 0 : index
    %53 = vector.load %arg2[%c4, %c0_30, %c0_31] : memref<8x8x32xf32, #tpu.memory_space<vmem>>, vector<1x8x32xf32>
    %54 = vector.shape_cast %53 : vector<1x8x32xf32> to vector<8x32xf32>
    %cst_32 = arith.constant dense<0.000000e+00> : vector<2x32xf32>
    %55 = tpu.matmul %52, %54, %cst_32 {dimension_numbers = #tpu.dot_dimension_numbers<[1], [0], [0], [1], [0, 0, 1, 1], [], []>} : vector<2x8xf32>, vector<8x32xf32>, vector<2x32xf32> -> vector<2x32xf32>
    %56 = vector.extract_strided_slice %4 {offsets = [0, 4, 32], sizes = [2, 1, 32], strides = [1, 1, 1]} : vector<2x8x64xf32> to vector<2x1x32xf32>
    %57 = vector.shape_cast %56 : vector<2x1x32xf32> to vector<2x32xf32>
    %58 = arith.addf %55, %57 : vector<2x32xf32>
    %c0_33 = arith.constant 0 : index
    %c4_34 = arith.constant 4 : index
    %c0_35 = arith.constant 0 : index
    %59 = vector.load %arg4[%c0_33, %c4_34, %c0_35] : memref<2x8x32xf32, #tpu.memory_space<vmem>>, vector<2x1x32xf32>
    %60 = vector.shape_cast %59 : vector<2x1x32xf32> to vector<2x32xf32>
    %61 = vector.shape_cast %58 : vector<2x32xf32> to vector<2x1x32xf32>
    tpu.vector_store %arg4[%c0_33, %c4_34, %c0_35], %61 {strides = array<i32>} : memref<2x8x32xf32, #tpu.memory_space<vmem>>, vector<2x1x32xf32>,
    %62 = vector.extract_strided_slice %6 {offsets = [0, 5, 0], sizes = [2, 1, 8], strides = [1, 1, 1]} : vector<2x8x8xf32> to vector<2x1x8xf32>
    %63 = vector.shape_cast %62 : vector<2x1x8xf32> to vector<2x8xf32>
    %c5 = arith.constant 5 : index
    %c0_36 = arith.constant 0 : index
    %c0_37 = arith.constant 0 : index
    %64 = vector.load %arg2[%c5, %c0_36, %c0_37] : memref<8x8x32xf32, #tpu.memory_space<vmem>>, vector<1x8x32xf32>
    %65 = vector.shape_cast %64 : vector<1x8x32xf32> to vector<8x32xf32>
    %cst_38 = arith.constant dense<0.000000e+00> : vector<2x32xf32>
    %66 = tpu.matmul %63, %65, %cst_38 {dimension_numbers = #tpu.dot_dimension_numbers<[1], [0], [0], [1], [0, 0, 1, 1], [], []>} : vector<2x8xf32>, vector<8x32xf32>, vector<2x32xf32> -> vector<2x32xf32>
    %67 = vector.extract_strided_slice %4 {offsets = [0, 5, 32], sizes = [2, 1, 32], strides = [1, 1, 1]} : vector<2x8x64xf32> to vector<2x1x32xf32>
    %68 = vector.shape_cast %67 : vector<2x1x32xf32> to vector<2x32xf32>
    %69 = arith.addf %66, %68 : vector<2x32xf32>
    %c0_39 = arith.constant 0 : index
    %c5_40 = arith.constant 5 : index
    %c0_41 = arith.constant 0 : index
    %70 = vector.load %arg4[%c0_39, %c5_40, %c0_41] : memref<2x8x32xf32, #tpu.memory_space<vmem>>, vector<2x1x32xf32>
    %71 = vector.shape_cast %70 : vector<2x1x32xf32> to vector<2x32xf32>
    %72 = vector.shape_cast %69 : vector<2x32xf32> to vector<2x1x32xf32>
    tpu.vector_store %arg4[%c0_39, %c5_40, %c0_41], %72 {strides = array<i32>} : memref<2x8x32xf32, #tpu.memory_space<vmem>>, vector<2x1x32xf32>,
    %73 = vector.extract_strided_slice %6 {offsets = [0, 6, 0], sizes = [2, 1, 8], strides = [1, 1, 1]} : vector<2x8x8xf32> to vector<2x1x8xf32>
    %74 = vector.shape_cast %73 : vector<2x1x8xf32> to vector<2x8xf32>
    %c6 = arith.constant 6 : index
    %c0_42 = arith.constant 0 : index
    %c0_43 = arith.constant 0 : index
    %75 = vector.load %arg2[%c6, %c0_42, %c0_43] : memref<8x8x32xf32, #tpu.memory_space<vmem>>, vector<1x8x32xf32>
    %76 = vector.shape_cast %75 : vector<1x8x32xf32> to vector<8x32xf32>
    %cst_44 = arith.constant dense<0.000000e+00> : vector<2x32xf32>
    %77 = tpu.matmul %74, %76, %cst_44 {dimension_numbers = #tpu.dot_dimension_numbers<[1], [0], [0], [1], [0, 0, 1, 1], [], []>} : vector<2x8xf32>, vector<8x32xf32>, vector<2x32xf32> -> vector<2x32xf32>
    %78 = vector.extract_strided_slice %4 {offsets = [0, 6, 32], sizes = [2, 1, 32], strides = [1, 1, 1]} : vector<2x8x64xf32> to vector<2x1x32xf32>
    %79 = vector.shape_cast %78 : vector<2x1x32xf32> to vector<2x32xf32>
    %80 = arith.addf %77, %79 : vector<2x32xf32>
    %c0_45 = arith.constant 0 : index
    %c6_46 = arith.constant 6 : index
    %c0_47 = arith.constant 0 : index
    %81 = vector.load %arg4[%c0_45, %c6_46, %c0_47] : memref<2x8x32xf32, #tpu.memory_space<vmem>>, vector<2x1x32xf32>
    %82 = vector.shape_cast %81 : vector<2x1x32xf32> to vector<2x32xf32>
    %83 = vector.shape_cast %80 : vector<2x32xf32> to vector<2x1x32xf32>
    tpu.vector_store %arg4[%c0_45, %c6_46, %c0_47], %83 {strides = array<i32>} : memref<2x8x32xf32, #tpu.memory_space<vmem>>, vector<2x1x32xf32>,
    %84 = vector.extract_strided_slice %6 {offsets = [0, 7, 0], sizes = [2, 1, 8], strides = [1, 1, 1]} : vector<2x8x8xf32> to vector<2x1x8xf32>
    %85 = vector.shape_cast %84 : vector<2x1x8xf32> to vector<2x8xf32>
    %c7 = arith.constant 7 : index
    %c0_48 = arith.constant 0 : index
    %c0_49 = arith.constant 0 : index
    %86 = vector.load %arg2[%c7, %c0_48, %c0_49] : memref<8x8x32xf32, #tpu.memory_space<vmem>>, vector<1x8x32xf32>
    %87 = vector.shape_cast %86 : vector<1x8x32xf32> to vector<8x32xf32>
    %cst_50 = arith.constant dense<0.000000e+00> : vector<2x32xf32>
    %88 = tpu.matmul %85, %87, %cst_50 {dimension_numbers = #tpu.dot_dimension_numbers<[1], [0], [0], [1], [0, 0, 1, 1], [], []>} : vector<2x8xf32>, vector<8x32xf32>, vector<2x32xf32> -> vector<2x32xf32>
    %89 = vector.extract_strided_slice %4 {offsets = [0, 7, 32], sizes = [2, 1, 32], strides = [1, 1, 1]} : vector<2x8x64xf32> to vector<2x1x32xf32>
    %90 = vector.shape_cast %89 : vector<2x1x32xf32> to vector<2x32xf32>
    %91 = arith.addf %88, %90 : vector<2x32xf32>
    %c0_51 = arith.constant 0 : index
    %c7_52 = arith.constant 7 : index
    %c0_53 = arith.constant 0 : index
    %92 = vector.load %arg4[%c0_51, %c7_52, %c0_53] : memref<2x8x32xf32, #tpu.memory_space<vmem>>, vector<2x1x32xf32>
    %93 = vector.shape_cast %92 : vector<2x1x32xf32> to vector<2x32xf32>
    %94 = vector.shape_cast %91 : vector<2x32xf32> to vector<2x1x32xf32>
    tpu.vector_store %arg4[%c0_51, %c7_52, %c0_53], %94 {strides = array<i32>} : memref<2x8x32xf32, #tpu.memory_space<vmem>>, vector<2x1x32xf32>,
    return
  }
  func.func @transform_0(%arg0: i32) -> (i32, i32, i32) {
    %c0_i32 = arith.constant 0 : i32
    %c0_i32_0 = arith.constant 0 : i32
    %c0_i32_1 = arith.constant 0 : i32
    return %arg0, %c0_i32, %c0_i32_0 : i32, i32, i32
  }
  func.func @transform_1(%arg0: i32) -> (i32, i32, i32) {
    %c0_i32 = arith.constant 0 : i32
    %c0_i32_0 = arith.constant 0 : i32
    %c0_i32_1 = arith.constant 0 : i32
    %c0_i32_2 = arith.constant 0 : i32
    return %c0_i32, %c0_i32_0, %c0_i32_1 : i32, i32, i32
  }
  func.func @transform_2(%arg0: i32) -> (i32, i32) {
    %c0_i32 = arith.constant 0 : i32
    %c0_i32_0 = arith.constant 0 : i32
    %c0_i32_1 = arith.constant 0 : i32
    return %c0_i32, %c0_i32_0 : i32, i32
  }
  func.func @transform_3(%arg0: i32) -> (i32, i32, i32) {
    %c0_i32 = arith.constant 0 : i32
    %c0_i32_0 = arith.constant 0 : i32
    %c0_i32_1 = arith.constant 0 : i32
    return %arg0, %c0_i32, %c0_i32_0 : i32, i32, i32
  }
}

</mosaic_0001>

<llo_original>
// kernel: sam3a.1
$region0: #{sam3a.1}
  #allocation0 [shape = 'u32[]', space=smem, size = 0x4, offset = 0x4, fixed_abs, tag = 'smem constant byte address 0x4 - core index']
  #allocation1 [shape = 'u32[144,128]{1,0:T(1,128)}', space=vmem, size = 0x12000, scoped, tag = 'internal scratch']
  %s0 = inlined_call_operand.vmem [shape: f32[2,8,32], index: 0, kind: input, shape index: {}]
  %s1 = inlined_call_operand.vmem [shape: f32[8,8,32], index: 1, kind: input, shape index: {}]
  %s2 = inlined_call_operand.vmem [shape: f32[32,64], index: 2, kind: input, shape index: {}]
  %s3 = inlined_call_operand.hbm [shape: f32[2,8,32], index: 3, kind: output, shape index: {}]
  %s4 = sld [smem:[#allocation0]]
  $region22: #{sam3a.1} parent=0
    _
  %s6 = ssub.s32 1, %s4
  %s7 = scalar_select 0, %s6, %s4
  $region1: #{sam3a.1} parent=0
    #allocation2 [shape = 'u8[8192]{0}', space=vmem, size = 0x2000, scoped, tag = 'output window, operand 0, single buffered']
    #allocation3 [shape = 's32[1]{0}', space=sflag, size = 0x4, scoped, tag = 'scoped memory for sam3a.1']
    %8 = vsyncpa [#allocation3], 0
    // Predicated region
    $region2: #{sam3a.1} parent=1 // pred_check
      _
    $region3: #{sam3a.1} parent=1 // pred_check_branch
      %10 = sbr.rel (0) target = $region5
    $region4: #{sam3a.1} parent=1 // pred_region
      _
    $region5: #{sam3a.1} parent=1 // pred_fallthru
      _
    // Predicated region
    $region6: #{sam3a.1} parent=1 // pred_check
      _
    $region7: #{sam3a.1} parent=1 // pred_check_branch
      %12 = sbr.rel (0) target = $region9
    $region8: #{sam3a.1} parent=1 // pred_region
      _
    $region9: #{sam3a.1} parent=1 // pred_fallthru
      _
    // Predicated region
    $region10: #{sam3a.1} parent=1 // pred_check
      _
    $region11: #{sam3a.1} parent=1 // pred_check_branch
      %14 = sbr.rel (0) target = $region13
    $region12: #{sam3a.1} parent=1 // pred_region
      _
    $region13: #{sam3a.1} parent=1 // pred_fallthru
      _
    %v15 = vld [vmem:[%s0] sm:$0xff]
    %v16 = vld [vmem:[%s0 + $0x8] sm:$0xff]
    %v17 = vld [vmem:[%s2] sm:$0xff]
    %v18 = vld [vmem:[%s2 + $0x8] sm:$0xff]
    %v19 = vld [vmem:[%s2 + $0x10] sm:$0xff]
    %v20 = vld [vmem:[%s2 + $0x18] sm:$0xff]
    %vm21 = vcmask 261120
    %v23 = vsel %vm21, %v15, 0
    %v26 = vsel %vm21, %v16, 0
    %28 = vmatprep.subr.mxu0 0.0
    %29 = vmatpush1.msra.mxu0 0.0
    %30 = vmatprep.subr.mxu0 0.0
    %31 = vmatpush1.msra.mxu0 0.0
    %32 = vmatprep.subr.mxu0 0.0
    %33 = vmatpush1.msra.mxu0 0.0
    %34 = vmatprep.subr.mxu0 0.0
    %35 = vmatpush1.msra.mxu0 0.0
    %36 = vmatprep.subr.mxu0 0.0
    %37 = vmatpush1.msra.mxu0 0.0
    %38 = vmatprep.subr.mxu0 0.0
    %39 = vmatpush1.msra.mxu0 0.0
    %40 = vmatprep.subr.mxu0 0.0
    %41 = vmatpush1.msra.mxu0 0.0
    %42 = vmatprep.subr.mxu0 0.0
    %43 = vmatpush1.msra.mxu0 0.0
    %44 = vmatprep.subr.mxu0 0.0
    %45 = vmatpush1.msra.mxu0 0.0
    %46 = vmatprep.subr.mxu0 0.0
    %47 = vmatpush1.msra.mxu0 0.0
    %48 = vmatprep.subr.mxu0 0.0
    %49 = vmatpush1.msra.mxu0 0.0
    %50 = vmatprep.subr.mxu0 0.0
    %51 = vmatpush1.msra.mxu0 0.0
    %52 = vmatprep.subr.mxu0 0.0
    %53 = vmatpush1.msra.mxu0 %v20
    %54 = vmatprep.subr.mxu0 0.0
    %55 = vmatpush1.msra.mxu0 %v19
    %56 = vmatprep.subr.mxu0 0.0
    %57 = vmatpush1.msra.mxu0 %v18
    %58 = vmatprep.subr.mxu0 0.0
    %59 = vmatpush1.msra.mxu0 %v17
    %60 = vmatprep.subr.mxu0 0.0
    %61 = vmatpush2.msra.mxu0 0.0
    %62 = vmatprep.subr.mxu0 0.0
    %63 = vmatpush2.msra.mxu0 0.0
    %64 = vmatprep.subr.mxu0 0.0
    %65 = vmatpush2.msra.mxu0 0.0
    %66 = vmatprep.subr.mxu0 0.0
    %67 = vmatpush2.msra.mxu0 0.0
    %68 = vmatprep.subr.mxu0 0.0
    %69 = vmatpush2.msra.mxu0 0.0
    %70 = vmatprep.subr.mxu0 0.0
    %71 = vmatpush2.msra.mxu0 0.0
    %72 = vmatprep.subr.mxu0 0.0
    %73 = vmatpush2.msra.mxu0 0.0
    %74 = vmatprep.subr.mxu0 0.0
    %75 = vmatpush2.msra.mxu0 0.0
    %76 = vmatprep.subr.mxu0 0.0
    %77 = vmatpush2.msra.mxu0 0.0
    %78 = vmatprep.subr.mxu0 0.0
    %79 = vmatpush2.msra.mxu0 0.0
    %80 = vmatprep.subr.mxu0 0.0
    %81 = vmatpush2.msra.mxu0 0.0
    %82 = vmatprep.subr.mxu0 0.0
    %83 = vmatpush2.msra.mxu0 0.0
    %84 = vmatprep.subr.mxu0 0.0
    %85 = vmatpush2.msra.mxu0 0.0
    %86 = vmatprep.subr.mxu0 0.0
    %87 = vmatpush2.msra.mxu0 0.0
    %88 = vmatprep.subr.mxu0 0.0
    %89 = vmatpush2.msra.mxu0 0.0
    %90 = vmatprep.subr.mxu0 0.0
    %91 = vmatpush2.msra.mxu0 0.0
    %92 = vmatprep.mubr.f32.mxu0 0.0
    %93 = vmatmul.mubr.f32.gmra.mxu0 %v23
    %v94 = vpop.f32.mrf.mxu0
    %v95 = vadd.f32 0.0, %v94
    %v96 = vpop.f32.mrf.mxu0
    %97 = vmatprep.mubr.f32.mxu0 0.0
    %98 = vmatmul.mubr.f32.gmra.mxu0 %v26
    %v99 = vpop.f32.mrf.mxu0
    %v100 = vadd.f32 0.0, %v99
    %v101 = vpop.f32.mrf.mxu0
    %102 = vdwg.mxu0
    %v104 = vsel %vm21, %v95, 0
    %106 = vmatprep.subr.mxu0 0.0
    %107 = vmatpush1.xpose.msra.mxu0 0.0
    %108 = vmatprep.subr.mxu0 0.0
    %109 = vmatpush1.xpose.msra.mxu0 0.0
    %110 = vmatprep.subr.mxu0 0.0
    %111 = vmatpush1.xpose.msra.mxu0 0.0
    %112 = vmatprep.subr.mxu0 0.0
    %113 = vmatpush1.xpose.msra.mxu0 0.0
    %114 = vmatprep.subr.mxu0 0.0
    %115 = vmatpush1.xpose.msra.mxu0 0.0
    %116 = vmatprep.subr.mxu0 0.0
    %117 = vmatpush1.xpose.msra.mxu0 0.0
    %118 = vmatprep.subr.mxu0 0.0
    %119 = vmatpush1.xpose.msra.mxu0 0.0
    %120 = vmatprep.subr.mxu0 0.0
    %121 = vmatpush1.xpose.msra.mxu0 0.0
    %122 = vmatprep.subr.mxu0 0.0
    %123 = vmatpush1.xpose.msra.mxu0 0.0
    %124 = vmatprep.subr.mxu0 0.0
    %125 = vmatpush1.xpose.msra.mxu0 0.0
    %126 = vmatprep.subr.mxu0 0.0
    %127 = vmatpush1.xpose.msra.mxu0 0.0
    %128 = vmatprep.subr.mxu0 0.0
    %129 = vmatpush1.xpose.msra.mxu0 0.0
    %130 = vmatprep.subr.mxu0 0.0
    %131 = vmatpush1.xpose.msra.mxu0 0.0
    %132 = vmatprep.subr.mxu0 0.0
    %133 = vmatpush1.xpose.msra.mxu0 0.0
    %134 = vmatprep.subr.mxu0 0.0
    %135 = vmatpush1.xpose.msra.mxu0 0.0
    %136 = vmatprep.subr.mxu0 0.0
    %137 = vmatpush1.xpose.msra.mxu0 %v104
    %138 = vmatprep.subr.mxu0 0.0
    %139 = vmatpush2.xpose.msra.mxu0 0.0
    %140 = vmatprep.subr.mxu0 0.0
    %141 = vmatpush2.xpose.msra.mxu0 0.0
    %142 = vmatprep.subr.mxu0 0.0
    %143 = vmatpush2.xpose.msra.mxu0 0.0
    %144 = vmatprep.subr.mxu0 0.0
    %145 = vmatpush2.xpose.msra.mxu0 0.0
    %146 = vmatprep.subr.mxu0 0.0
    %147 = vmatpush2.xpose.msra.mxu0 0.0
    %148 = vmatprep.subr.mxu0 0.0
    %149 = vmatpush2.xpose.msra.mxu0 0.0
    %150 = vmatprep.subr.mxu0 0.0
    %151 = vmatpush2.xpose.msra.mxu0 0.0
    %152 = vmatprep.subr.mxu0 0.0
    %153 = vmatpush2.xpose.msra.mxu0 0.0
    %154 = vmatprep.subr.mxu0 0.0
    %155 = vmatpush2.xpose.msra.mxu0 0.0
    %156 = vmatprep.subr.mxu0 0.0
    %157 = vmatpush2.xpose.msra.mxu0 0.0
    %158 = vmatprep.subr.mxu0 0.0
    %159 = vmatpush2.xpose.msra.mxu0 0.0
    %160 = vmatprep.subr.mxu0 0.0
    %161 = vmatpush2.xpose.msra.mxu0 0.0
    %162 = vmatprep.subr.mxu0 0.0
    %163 = vmatpush2.xpose.msra.mxu0 0.0
    %164 = vmatprep.subr.mxu0 0.0
    %165 = vmatpush2.xpose.msra.mxu0 0.0
    %166 = vmatprep.subr.mxu0 0.0
    %167 = vmatpush2.xpose.msra.mxu0 0.0
    %168 = vmatprep.subr.mxu0 0.0
    %169 = vmatpush2.xpose.msra.mxu0 0.0
    %170 = vmatprep.mubr.f32.mxu0 0.0
    %171 = vmatmul.mubr.f32.gmra.mxu0 %v23
    %v172 = vpop.f32.mrf.mxu0
    %v173 = vadd.f32 0.0, %v172
    %v174 = vpop.f32.mrf.mxu0
    %175 = vdwg.mxu0
    %v177 = vsel %vm21, %v100, 0
    %179 = vmatprep.subr.mxu0 0.0
    %180 = vmatpush1.xpose.msra.mxu0 0.0
    %181 = vmatprep.subr.mxu0 0.0
    %182 = vmatpush1.xpose.msra.mxu0 0.0
    %183 = vmatprep.subr.mxu0 0.0
    %184 = vmatpush1.xpose.msra.mxu0 0.0
    %185 = vmatprep.subr.mxu0 0.0
    %186 = vmatpush1.xpose.msra.mxu0 0.0
    %187 = vmatprep.subr.mxu0 0.0
    %188 = vmatpush1.xpose.msra.mxu0 0.0
    %189 = vmatprep.subr.mxu0 0.0
    %190 = vmatpush1.xpose.msra.mxu0 0.0
    %191 = vmatprep.subr.mxu0 0.0
    %192 = vmatpush1.xpose.msra.mxu0 0.0
    %193 = vmatprep.subr.mxu0 0.0
    %194 = vmatpush1.xpose.msra.mxu0 0.0
    %195 = vmatprep.subr.mxu0 0.0
    %196 = vmatpush1.xpose.msra.mxu0 0.0
    %197 = vmatprep.subr.mxu0 0.0
    %198 = vmatpush1.xpose.msra.mxu0 0.0
    %199 = vmatprep.subr.mxu0 0.0
    %200 = vmatpush1.xpose.msra.mxu0 0.0
    %201 = vmatprep.subr.mxu0 0.0
    %202 = vmatpush1.xpose.msra.mxu0 0.0
    %203 = vmatprep.subr.mxu0 0.0
    %204 = vmatpush1.xpose.msra.mxu0 0.0
    %205 = vmatprep.subr.mxu0 0.0
    %206 = vmatpush1.xpose.msra.mxu0 0.0
    %207 = vmatprep.subr.mxu0 0.0
    %208 = vmatpush1.xpose.msra.mxu0 0.0
    %209 = vmatprep.subr.mxu0 0.0
    %210 = vmatpush1.xpose.msra.mxu0 %v177
    %211 = vmatprep.subr.mxu0 0.0
    %212 = vmatpush2.xpose.msra.mxu0 0.0
    %213 = vmatprep.subr.mxu0 0.0
    %214 = vmatpush2.xpose.msra.mxu0 0.0
    %215 = vmatprep.subr.mxu0 0.0
    %216 = vmatpush2.xpose.msra.mxu0 0.0
    %217 = vmatprep.subr.mxu0 0.0
    %218 = vmatpush2.xpose.msra.mxu0 0.0
    %219 = vmatprep.subr.mxu0 0.0
    %220 = vmatpush2.xpose.msra.mxu0 0.0
    %221 = vmatprep.subr.mxu0 0.0
    %222 = vmatpush2.xpose.msra.mxu0 0.0
    %223 = vmatprep.subr.mxu0 0.0
    %224 = vmatpush2.xpose.msra.mxu0 0.0
    %225 = vmatprep.subr.mxu0 0.0
    %226 = vmatpush2.xpose.msra.mxu0 0.0
    %227 = vmatprep.subr.mxu0 0.0
    %228 = vmatpush2.xpose.msra.mxu0 0.0
    %229 = vmatprep.subr.mxu0 0.0
    %230 = vmatpush2.xpose.msra.mxu0 0.0
    %231 = vmatprep.subr.mxu0 0.0
    %232 = vmatpush2.xpose.msra.mxu0 0.0
    %233 = vmatprep.subr.mxu0 0.0
    %234 = vmatpush2.xpose.msra.mxu0 0.0
    %235 = vmatprep.subr.mxu0 0.0
    %236 = vmatpush2.xpose.msra.mxu0 0.0
    %237 = vmatprep.subr.mxu0 0.0
    %238 = vmatpush2.xpose.msra.mxu0 0.0
    %239 = vmatprep.subr.mxu0 0.0
    %240 = vmatpush2.xpose.msra.mxu0 0.0
    %241 = vmatprep.subr.mxu0 0.0
    %242 = vmatpush2.xpose.msra.mxu0 0.0
    %243 = vmatprep.mubr.f32.mxu0 0.0
    %244 = vmatmul.mubr.f32.gmra.mxu0 %v26
    %v245 = vpop.f32.mrf.mxu0
    %v246 = vadd.f32 0.0, %v245
    %v247 = vpop.f32.mrf.mxu0
    %248 = vdwg.mxu0
    %v249 = vld [vmem:[%s1] sm:$0xff]
    %v252 = vrot.slane %v246, 7
    %vm253 = vcmask 1041409
    %v254 = vsel %vm253, %v252, %v173
    %v255 = vrot.slane %v100, 7
    %v256 = vsel %vm253, %v255, %v95
    %257 = vrot.lane.b32.xlu0 %v256, 96
    %v258 = vpop.permute.xlu0 %257
    %vm260 = vcmask 64512
    %v261 = vsel %vm260, %v254, 0
    %263 = vmatprep.subr.mxu0 0.0
    %264 = vmatpush1.msra.mxu0 0.0
    %265 = vmatprep.subr.mxu0 0.0
    %266 = vmatpush1.msra.mxu0 0.0
    %267 = vmatprep.subr.mxu0 0.0
    %268 = vmatpush1.msra.mxu0 0.0
    %269 = vmatprep.subr.mxu0 0.0
    %270 = vmatpush1.msra.mxu0 0.0
    %271 = vmatprep.subr.mxu0 0.0
    %272 = vmatpush1.msra.mxu0 0.0
    %273 = vmatprep.subr.mxu0 0.0
    %274 = vmatpush1.msra.mxu0 0.0
    %275 = vmatprep.subr.mxu0 0.0
    %276 = vmatpush1.msra.mxu0 0.0
    %277 = vmatprep.subr.mxu0 0.0
    %278 = vmatpush1.msra.mxu0 0.0
    %279 = vmatprep.subr.mxu0 0.0
    %280 = vmatpush1.msra.mxu0 0.0
    %281 = vmatprep.subr.mxu0 0.0
    %282 = vmatpush1.msra.mxu0 0.0
    %283 = vmatprep.subr.mxu0 0.0
    %284 = vmatpush1.msra.mxu0 0.0
    %285 = vmatprep.subr.mxu0 0.0
    %286 = vmatpush1.msra.mxu0 0.0
    %287 = vmatprep.subr.mxu0 0.0
    %288 = vmatpush1.msra.mxu0 0.0
    %289 = vmatprep.subr.mxu0 0.0
    %290 = vmatpush1.msra.mxu0 0.0
    %291 = vmatprep.subr.mxu0 0.0
    %292 = vmatpush1.msra.mxu0 0.0
    %293 = vmatprep.subr.mxu0 0.0
    %294 = vmatpush1.msra.mxu0 %v249
    %295 = vmatprep.subr.mxu0 0.0
    %296 = vmatpush2.msra.mxu0 0.0
    %297 = vmatprep.subr.mxu0 0.0
    %298 = vmatpush2.msra.mxu0 0.0
    %299 = vmatprep.subr.mxu0 0.0
    %300 = vmatpush2.msra.mxu0 0.0
    %301 = vmatprep.subr.mxu0 0.0
    %302 = vmatpush2.msra.mxu0 0.0
    %303 = vmatprep.subr.mxu0 0.0
    %304 = vmatpush2.msra.mxu0 0.0
    %305 = vmatprep.subr.mxu0 0.0
    %306 = vmatpush2.msra.mxu0 0.0
    %307 = vmatprep.subr.mxu0 0.0
    %308 = vmatpush2.msra.mxu0 0.0
    %309 = vmatprep.subr.mxu0 0.0
    %310 = vmatpush2.msra.mxu0 0.0
    %311 = vmatprep.subr.mxu0 0.0
    %312 = vmatpush2.msra.mxu0 0.0
    %313 = vmatprep.subr.mxu0 0.0
    %314 = vmatpush2.msra.mxu0 0.0
    %315 = vmatprep.subr.mxu0 0.0
    %316 = vmatpush2.msra.mxu0 0.0
    %317 = vmatprep.subr.mxu0 0.0
    %318 = vmatpush2.msra.mxu0 0.0
    %319 = vmatprep.subr.mxu0 0.0
    %320 = vmatpush2.msra.mxu0 0.0
    %321 = vmatprep.subr.mxu0 0.0
    %322 = vmatpush2.msra.mxu0 0.0
    %323 = vmatprep.subr.mxu0 0.0
    %324 = vmatpush2.msra.mxu0 0.0
    %325 = vmatprep.subr.mxu0 0.0
    %326 = vmatpush2.msra.mxu0 0.0
    %327 = vmatprep.mubr.f32.mxu0 0.0
    %328 = vmatmul.mubr.f32.gmra.mxu0 %v261
    %v329 = vpop.f32.mrf.mxu0
    %v330 = vadd.f32 %v258, %v329
    %v331 = vpop.f32.mrf.mxu0
    %332 = vdwg.mxu0
    %v335 = vunpack.c.l.s4 1966171168
    %v336 = vunpack.c.0.s8 %v335
    %v337 = vlaneseq
    %v338 = vshrl.u32 %v337, 7
    %v339 = vsub.s32 %v336, %v338
    %v340 = vrot.slane %v330, %v339
    %v341 = vcombine.high %v340, %v340
    %v343 = vunpack.c.l.s4 1966171168
    %v344 = vunpack.c.0.s8 %v343
    %v345 = vlaneseq
    %v346 = vshrl.u32 %v345, 7
    %v347 = vsub.s32 %v344, %v346
    %v348 = vrot.slane %v340, %v347
    %v350 = vunpack.c.l.s4 1966171168
    %v351 = vunpack.c.0.s8 %v350
    %v352 = vlaneseq
    %v353 = vshrl.u32 %v352, 7
    %v354 = vsub.s32 %v351, %v353
    %v355 = vrot.slane %v341, %v354
    %vm358 = vcmask 253952
    %359 = vst.msk [vmem:[#allocation2] sm:$0x1] %vm358, %v348
    %360 = vst.msk [vmem:[#allocation2 + $0x8] sm:$0x1] %vm358, %v355
    %s361 = scalar_lea.vmem %s1, 8
    %v362 = vld [vmem:[%s361] sm:$0xff]
    %v363 = vrot.slane %v173, 1
    %v364 = vsel %vm253, %v246, %v363
    %v365 = vrot.slane %v95, 1
    %v366 = vsel %vm253, %v100, %v365
    %367 = vrot.lane.b32.xlu0 %v366, 96
    %v368 = vpop.permute.xlu0 %367
    %v370 = vsel %vm260, %v364, 0
    %372 = vmatprep.subr.mxu0 0.0
    %373 = vmatpush1.msra.mxu0 0.0
    %374 = vmatprep.subr.mxu0 0.0
    %375 = vmatpush1.msra.mxu0 0.0
    %376 = vmatprep.subr.mxu0 0.0
    %377 = vmatpush1.msra.mxu0 0.0
    %378 = vmatprep.subr.mxu0 0.0
    %379 = vmatpush1.msra.mxu0 0.0
    %380 = vmatprep.subr.mxu0 0.0
    %381 = vmatpush1.msra.mxu0 0.0
    %382 = vmatprep.subr.mxu0 0.0
    %383 = vmatpush1.msra.mxu0 0.0
    %384 = vmatprep.subr.mxu0 0.0
    %385 = vmatpush1.msra.mxu0 0.0
    %386 = vmatprep.subr.mxu0 0.0
    %387 = vmatpush1.msra.mxu0 0.0
    %388 = vmatprep.subr.mxu0 0.0
    %389 = vmatpush1.msra.mxu0 0.0
    %390 = vmatprep.subr.mxu0 0.0
    %391 = vmatpush1.msra.mxu0 0.0
    %392 = vmatprep.subr.mxu0 0.0
    %393 = vmatpush1.msra.mxu0 0.0
    %394 = vmatprep.subr.mxu0 0.0
    %395 = vmatpush1.msra.mxu0 0.0
    %396 = vmatprep.subr.mxu0 0.0
    %397 = vmatpush1.msra.mxu0 0.0
    %398 = vmatprep.subr.mxu0 0.0
    %399 = vmatpush1.msra.mxu0 0.0
    %400 = vmatprep.subr.mxu0 0.0
    %401 = vmatpush1.msra.mxu0 0.0
    %402 = vmatprep.subr.mxu0 0.0
    %403 = vmatpush1.msra.mxu0 %v362
    %404 = vmatprep.subr.mxu0 0.0
    %405 = vmatpush2.msra.mxu0 0.0
    %406 = vmatprep.subr.mxu0 0.0
    %407 = vmatpush2.msra.mxu0 0.0
    %408 = vmatprep.subr.mxu0 0.0
    %409 = vmatpush2.msra.mxu0 0.0
    %410 = vmatprep.subr.mxu0 0.0
    %411 = vmatpush2.msra.mxu0 0.0
    %412 = vmatprep.subr.mxu0 0.0
    %413 = vmatpush2.msra.mxu0 0.0
    %414 = vmatprep.subr.mxu0 0.0
    %415 = vmatpush2.msra.mxu0 0.0
    %416 = vmatprep.subr.mxu0 0.0
    %417 = vmatpush2.msra.mxu0 0.0
    %418 = vmatprep.subr.mxu0 0.0
    %419 = vmatpush2.msra.mxu0 0.0
    %420 = vmatprep.subr.mxu0 0.0
    %421 = vmatpush2.msra.mxu0 0.0
    %422 = vmatprep.subr.mxu0 0.0
    %423 = vmatpush2.msra.mxu0 0.0
    %424 = vmatprep.subr.mxu0 0.0
    %425 = vmatpush2.msra.mxu0 0.0
    %426 = vmatprep.subr.mxu0 0.0
    %427 = vmatpush2.msra.mxu0 0.0
    %428 = vmatprep.subr.mxu0 0.0
    %429 = vmatpush2.msra.mxu0 0.0
    %430 = vmatprep.subr.mxu0 0.0
    %431 = vmatpush2.msra.mxu0 0.0
    %432 = vmatprep.subr.mxu0 0.0
    %433 = vmatpush2.msra.mxu0 0.0
    %434 = vmatprep.subr.mxu0 0.0
    %435 = vmatpush2.msra.mxu0 0.0
    %436 = vmatprep.mubr.f32.mxu0 0.0
    %437 = vmatmul.mubr.f32.gmra.mxu0 %v370
    %v438 = vpop.f32.mrf.mxu0
    %v439 = vadd.f32 %v368, %v438
    %v440 = vpop.f32.mrf.mxu0
    %441 = vdwg.mxu0
    %v444 = vunpack.c.l.s4 1966171168
    %v445 = vunpack.c.0.s8 %v444
    %v446 = vlaneseq
    %v447 = vshrl.u32 %v446, 7
    %v448 = vsub.s32 %v445, %v447
    %v449 = vrot.slane %v439, %v448
    %v450 = vcombine.high %v449, %v449
    %v452 = vunpack.c.l.s4 1966171168
    %v453 = vunpack.c.0.s8 %v452
    %v454 = vlaneseq
    %v455 = vshrl.u32 %v454, 7
    %v456 = vsub.s32 %v453, %v455
    %v457 = vrot.slane %v449, %v456
    %v459 = vunpack.c.l.s4 1966171168
    %v460 = vunpack.c.0.s8 %v459
    %v461 = vlaneseq
    %v462 = vshrl.u32 %v461, 7
    %v463 = vsub.s32 %v460, %v462
    %v464 = vrot.slane %v450, %v463
    %467 = vst.msk [vmem:[#allocation2 + $0x1] sm:$0x1] %vm358, %v457
    %468 = vst.msk [vmem:[#allocation2 + $0x9] sm:$0x1] %vm358, %v464
    %s469 = scalar_lea.vmem %s1, 16
    %v470 = vld [vmem:[%s469] sm:$0xff]
    %v471 = vrot.slane %v173, 2
    %v472 = vrot.slane %v246, 1
    %v473 = vsel %vm253, %v472, %v471
    %v474 = vrot.slane %v95, 2
    %v475 = vrot.slane %v100, 1
    %v476 = vsel %vm253, %v475, %v474
    %477 = vrot.lane.b32.xlu0 %v476, 96
    %v478 = vpop.permute.xlu0 %477
    %v480 = vsel %vm260, %v473, 0
    %482 = vmatprep.subr.mxu0 0.0
    %483 = vmatpush1.msra.mxu0 0.0
    %484 = vmatprep.subr.mxu0 0.0
    %485 = vmatpush1.msra.mxu0 0.0
    %486 = vmatprep.subr.mxu0 0.0
    %487 = vmatpush1.msra.mxu0 0.0
    %488 = vmatprep.subr.mxu0 0.0
    %489 = vmatpush1.msra.mxu0 0.0
    %490 = vmatprep.subr.mxu0 0.0
    %491 = vmatpush1.msra.mxu0 0.0
    %492 = vmatprep.subr.mxu0 0.0
    %493 = vmatpush1.msra.mxu0 0.0
    %494 = vmatprep.subr.mxu0 0.0
    %495 = vmatpush1.msra.mxu0 0.0
    %496 = vmatprep.subr.mxu0 0.0
    %497 = vmatpush1.msra.mxu0 0.0
    %498 = vmatprep.subr.mxu0 0.0
    %499 = vmatpush1.msra.mxu0 0.0
    %500 = vmatprep.subr.mxu0 0.0
    %501 = vmatpush1.msra.mxu0 0.0
    %502 = vmatprep.subr.mxu0 0.0
    %503 = vmatpush1.msra.mxu0 0.0
    %504 = vmatprep.subr.mxu0 0.0
    %505 = vmatpush1.msra.mxu0 0.0
    %506 = vmatprep.subr.mxu0 0.0
    %507 = vmatpush1.msra.mxu0 0.0
    %508 = vmatprep.subr.mxu0 0.0
    %509 = vmatpush1.msra.mxu0 0.0
    %510 = vmatprep.subr.mxu0 0.0
    %511 = vmatpush1.msra.mxu0 0.0
    %512 = vmatprep.subr.mxu0 0.0
    %513 = vmatpush1.msra.mxu0 %v470
    %514 = vmatprep.subr.mxu0 0.0
    %515 = vmatpush2.msra.mxu0 0.0
    %516 = vmatprep.subr.mxu0 0.0
    %517 = vmatpush2.msra.mxu0 0.0
    %518 = vmatprep.subr.mxu0 0.0
    %519 = vmatpush2.msra.mxu0 0.0
    %520 = vmatprep.subr.mxu0 0.0
    %521 = vmatpush2.msra.mxu0 0.0
    %522 = vmatprep.subr.mxu0 0.0
    %523 = vmatpush2.msra.mxu0 0.0
    %524 = vmatprep.subr.mxu0 0.0
    %525 = vmatpush2.msra.mxu0 0.0
    %526 = vmatprep.subr.mxu0 0.0
    %527 = vmatpush2.msra.mxu0 0.0
    %528 = vmatprep.subr.mxu0 0.0
    %529 = vmatpush2.msra.mxu0 0.0
    %530 = vmatprep.subr.mxu0 0.0
    %531 = vmatpush2.msra.mxu0 0.0
    %532 = vmatprep.subr.mxu0 0.0
    %533 = vmatpush2.msra.mxu0 0.0
    %534 = vmatprep.subr.mxu0 0.0
    %535 = vmatpush2.msra.mxu0 0.0
    %536 = vmatprep.subr.mxu0 0.0
    %537 = vmatpush2.msra.mxu0 0.0
    %538 = vmatprep.subr.mxu0 0.0
    %539 = vmatpush2.msra.mxu0 0.0
    %540 = vmatprep.subr.mxu0 0.0
    %541 = vmatpush2.msra.mxu0 0.0
    %542 = vmatprep.subr.mxu0 0.0
    %543 = vmatpush2.msra.mxu0 0.0
    %544 = vmatprep.subr.mxu0 0.0
    %545 = vmatpush2.msra.mxu0 0.0
    %546 = vmatprep.mubr.f32.mxu0 0.0
    %547 = vmatmul.mubr.f32.gmra.mxu0 %v480
    %v548 = vpop.f32.mrf.mxu0
    %v549 = vadd.f32 %v478, %v548
    %v550 = vpop.f32.mrf.mxu0
    %551 = vdwg.mxu0
    %v554 = vunpack.c.l.s4 1966171168
    %v555 = vunpack.c.0.s8 %v554
    %v556 = vlaneseq
    %v557 = vshrl.u32 %v556, 7
    %v558 = vsub.s32 %v555, %v557
    %v559 = vrot.slane %v549, %v558
    %v560 = vcombine.high %v559, %v559
    %v562 = vunpack.c.l.s4 1966171168
    %v563 = vunpack.c.0.s8 %v562
    %v564 = vlaneseq
    %v565 = vshrl.u32 %v564, 7
    %v566 = vsub.s32 %v563, %v565
    %v567 = vrot.slane %v559, %v566
    %v569 = vunpack.c.l.s4 1966171168
    %v570 = vunpack.c.0.s8 %v569
    %v571 = vlaneseq
    %v572 = vshrl.u32 %v571, 7
    %v573 = vsub.s32 %v570, %v572
    %v574 = vrot.slane %v560, %v573
    %577 = vst.msk [vmem:[#allocation2 + $0x2] sm:$0x1] %vm358, %v567
    %578 = vst.msk [vmem:[#allocation2 + $0xa] sm:$0x1] %vm358, %v574
    %s579 = scalar_lea.vmem %s1, 24
    %v580 = vld [vmem:[%s579] sm:$0xff]
    %v581 = vrot.slane %v173, 3
    %v582 = vrot.slane %v246, 2
    %v583 = vsel %vm253, %v582, %v581
    %v584 = vrot.slane %v95, 3
    %v585 = vrot.slane %v100, 2
    %v586 = vsel %vm253, %v585, %v584
    %587 = vrot.lane.b32.xlu0 %v586, 96
    %v588 = vpop.permute.xlu0 %587
    %v590 = vsel %vm260, %v583, 0
    %592 = vmatprep.subr.mxu0 0.0
    %593 = vmatpush1.msra.mxu0 0.0
    %594 = vmatprep.subr.mxu0 0.0
    %595 = vmatpush1.msra.mxu0 0.0
    %596 = vmatprep.subr.mxu0 0.0
    %597 = vmatpush1.msra.mxu0 0.0
    %598 = vmatprep.subr.mxu0 0.0
    %599 = vmatpush1.msra.mxu0 0.0
    %600 = vmatprep.subr.mxu0 0.0
    %601 = vmatpush1.msra.mxu0 0.0
    %602 = vmatprep.subr.mxu0 0.0
    %603 = vmatpush1.msra.mxu0 0.0
    %604 = vmatprep.subr.mxu0 0.0
    %605 = vmatpush1.msra.mxu0 0.0
    %606 = vmatprep.subr.mxu0 0.0
    %607 = vmatpush1.msra.mxu0 0.0
    %608 = vmatprep.subr.mxu0 0.0
    %609 = vmatpush1.msra.mxu0 0.0
    %610 = vmatprep.subr.mxu0 0.0
    %611 = vmatpush1.msra.mxu0 0.0
    %612 = vmatprep.subr.mxu0 0.0
    %613 = vmatpush1.msra.mxu0 0.0
    %614 = vmatprep.subr.mxu0 0.0
    %615 = vmatpush1.msra.mxu0 0.0
    %616 = vmatprep.subr.mxu0 0.0
    %617 = vmatpush1.msra.mxu0 0.0
    %618 = vmatprep.subr.mxu0 0.0
    %619 = vmatpush1.msra.mxu0 0.0
    %620 = vmatprep.subr.mxu0 0.0
    %621 = vmatpush1.msra.mxu0 0.0
    %622 = vmatprep.subr.mxu0 0.0
    %623 = vmatpush1.msra.mxu0 %v580
    %624 = vmatprep.subr.mxu0 0.0
    %625 = vmatpush2.msra.mxu0 0.0
    %626 = vmatprep.subr.mxu0 0.0
    %627 = vmatpush2.msra.mxu0 0.0
    %628 = vmatprep.subr.mxu0 0.0
    %629 = vmatpush2.msra.mxu0 0.0
    %630 = vmatprep.subr.mxu0 0.0
    %631 = vmatpush2.msra.mxu0 0.0
    %632 = vmatprep.subr.mxu0 0.0
    %633 = vmatpush2.msra.mxu0 0.0
    %634 = vmatprep.subr.mxu0 0.0
    %635 = vmatpush2.msra.mxu0 0.0
    %636 = vmatprep.subr.mxu0 0.0
    %637 = vmatpush2.msra.mxu0 0.0
    %638 = vmatprep.subr.mxu0 0.0
    %639 = vmatpush2.msra.mxu0 0.0
    %640 = vmatprep.subr.mxu0 0.0
    %641 = vmatpush2.msra.mxu0 0.0
    %642 = vmatprep.subr.mxu0 0.0
    %643 = vmatpush2.msra.mxu0 0.0
    %644 = vmatprep.subr.mxu0 0.0
    %645 = vmatpush2.msra.mxu0 0.0
    %646 = vmatprep.subr.mxu0 0.0
    %647 = vmatpush2.msra.mxu0 0.0
    %648 = vmatprep.subr.mxu0 0.0
    %649 = vmatpush2.msra.mxu0 0.0
    %650 = vmatprep.subr.mxu0 0.0
    %651 = vmatpush2.msra.mxu0 0.0
    %652 = vmatprep.subr.mxu0 0.0
    %653 = vmatpush2.msra.mxu0 0.0
    %654 = vmatprep.subr.mxu0 0.0
    %655 = vmatpush2.msra.mxu0 0.0
    %656 = vmatprep.mubr.f32.mxu0 0.0
    %657 = vmatmul.mubr.f32.gmra.mxu0 %v590
    %v658 = vpop.f32.mrf.mxu0
    %v659 = vadd.f32 %v588, %v658
    %v660 = vpop.f32.mrf.mxu0
    %661 = vdwg.mxu0
    %v664 = vunpack.c.l.s4 1966171168
    %v665 = vunpack.c.0.s8 %v664
    %v666 = vlaneseq
    %v667 = vshrl.u32 %v666, 7
    %v668 = vsub.s32 %v665, %v667
    %v669 = vrot.slane %v659, %v668
    %v670 = vcombine.high %v669, %v669
    %v672 = vunpack.c.l.s4 1966171168
    %v673 = vunpack.c.0.s8 %v672
    %v674 = vlaneseq
    %v675 = vshrl.u32 %v674, 7
    %v676 = vsub.s32 %v673, %v675
    %v677 = vrot.slane %v669, %v676
    %v679 = vunpack.c.l.s4 1966171168
    %v680 = vunpack.c.0.s8 %v679
    %v681 = vlaneseq
    %v682 = vshrl.u32 %v681, 7
    %v683 = vsub.s32 %v680, %v682
    %v684 = vrot.slane %v670, %v683
    %687 = vst.msk [vmem:[#allocation2 + $0x3] sm:$0x1] %vm358, %v677
    %688 = vst.msk [vmem:[#allocation2 + $0xb] sm:$0x1] %vm358, %v684
    %s689 = scalar_lea.vmem %s1, 32
    %v690 = vld [vmem:[%s689] sm:$0xff]
    %v691 = vrot.slane %v173, 4
    %v692 = vrot.slane %v246, 3
    %v693 = vsel %vm253, %v692, %v691
    %v694 = vrot.slane %v95, 4
    %v695 = vrot.slane %v100, 3
    %v696 = vsel %vm253, %v695, %v694
    %697 = vrot.lane.b32.xlu0 %v696, 96
    %v698 = vpop.permute.xlu0 %697
    %v700 = vsel %vm260, %v693, 0
    %702 = vmatprep.subr.mxu0 0.0
    %703 = vmatpush1.msra.mxu0 0.0
    %704 = vmatprep.subr.mxu0 0.0
    %705 = vmatpush1.msra.mxu0 0.0
    %706 = vmatprep.subr.mxu0 0.0
    %707 = vmatpush1.msra.mxu0 0.0
    %708 = vmatprep.subr.mxu0 0.0
    %709 = vmatpush1.msra.mxu0 0.0
    %710 = vmatprep.subr.mxu0 0.0
    %711 = vmatpush1.msra.mxu0 0.0
    %712 = vmatprep.subr.mxu0 0.0
    %713 = vmatpush1.msra.mxu0 0.0
    %714 = vmatprep.subr.mxu0 0.0
    %715 = vmatpush1.msra.mxu0 0.0
    %716 = vmatprep.subr.mxu0 0.0
    %717 = vmatpush1.msra.mxu0 0.0
    %718 = vmatprep.subr.mxu0 0.0
    %719 = vmatpush1.msra.mxu0 0.0
    %720 = vmatprep.subr.mxu0 0.0
    %721 = vmatpush1.msra.mxu0 0.0
    %722 = vmatprep.subr.mxu0 0.0
    %723 = vmatpush1.msra.mxu0 0.0
    %724 = vmatprep.subr.mxu0 0.0
    %725 = vmatpush1.msra.mxu0 0.0
    %726 = vmatprep.subr.mxu0 0.0
    %727 = vmatpush1.msra.mxu0 0.0
    %728 = vmatprep.subr.mxu0 0.0
    %729 = vmatpush1.msra.mxu0 0.0
    %730 = vmatprep.subr.mxu0 0.0
    %731 = vmatpush1.msra.mxu0 0.0
    %732 = vmatprep.subr.mxu0 0.0
    %733 = vmatpush1.msra.mxu0 %v690
    %734 = vmatprep.subr.mxu0 0.0
    %735 = vmatpush2.msra.mxu0 0.0
    %736 = vmatprep.subr.mxu0 0.0
    %737 = vmatpush2.msra.mxu0 0.0
    %738 = vmatprep.subr.mxu0 0.0
    %739 = vmatpush2.msra.mxu0 0.0
    %740 = vmatprep.subr.mxu0 0.0
    %741 = vmatpush2.msra.mxu0 0.0
    %742 = vmatprep.subr.mxu0 0.0
    %743 = vmatpush2.msra.mxu0 0.0
    %744 = vmatprep.subr.mxu0 0.0
    %745 = vmatpush2.msra.mxu0 0.0
    %746 = vmatprep.subr.mxu0 0.0
    %747 = vmatpush2.msra.mxu0 0.0
    %748 = vmatprep.subr.mxu0 0.0
    %749 = vmatpush2.msra.mxu0 0.0
    %750 = vmatprep.subr.mxu0 0.0
    %751 = vmatpush2.msra.mxu0 0.0
    %752 = vmatprep.subr.mxu0 0.0
    %753 = vmatpush2.msra.mxu0 0.0
    %754 = vmatprep.subr.mxu0 0.0
    %755 = vmatpush2.msra.mxu0 0.0
    %756 = vmatprep.subr.mxu0 0.0
    %757 = vmatpush2.msra.mxu0 0.0
    %758 = vmatprep.subr.mxu0 0.0
    %759 = vmatpush2.msra.mxu0 0.0
    %760 = vmatprep.subr.mxu0 0.0
    %761 = vmatpush2.msra.mxu0 0.0
    %762 = vmatprep.subr.mxu0 0.0
    %763 = vmatpush2.msra.mxu0 0.0
    %764 = vmatprep.subr.mxu0 0.0
    %765 = vmatpush2.msra.mxu0 0.0
    %766 = vmatprep.mubr.f32.mxu0 0.0
    %767 = vmatmul.mubr.f32.gmra.mxu0 %v700
    %v768 = vpop.f32.mrf.mxu0
    %v769 = vadd.f32 %v698, %v768
    %v770 = vpop.f32.mrf.mxu0
    %771 = vdwg.mxu0
    %v774 = vunpack.c.l.s4 1966171168
    %v775 = vunpack.c.0.s8 %v774
    %v776 = vlaneseq
    %v777 = vshrl.u32 %v776, 7
    %v778 = vsub.s32 %v775, %v777
    %v779 = vrot.slane %v769, %v778
    %v780 = vcombine.high %v779, %v779
    %v782 = vunpack.c.l.s4 1966171168
    %v783 = vunpack.c.0.s8 %v782
    %v784 = vlaneseq
    %v785 = vshrl.u32 %v784, 7
    %v786 = vsub.s32 %v783, %v785
    %v787 = vrot.slane %v779, %v786
    %v789 = vunpack.c.l.s4 1966171168
    %v790 = vunpack.c.0.s8 %v789
    %v791 = vlaneseq
    %v792 = vshrl.u32 %v791, 7
    %v793 = vsub.s32 %v790, %v792
    %v794 = vrot.slane %v780, %v793
    %797 = vst.msk [vmem:[#allocation2 + $0x4] sm:$0x1] %vm358, %v787
    %798 = vst.msk [vmem:[#allocation2 + $0xc] sm:$0x1] %vm358, %v794
    %s799 = scalar_lea.vmem %s1, 40
    %v800 = vld [vmem:[%s799] sm:$0xff]
    %v801 = vrot.slane %v173, 5
    %v802 = vrot.slane %v246, 4
    %v803 = vsel %vm253, %v802, %v801
    %v804 = vrot.slane %v95, 5
    %v805 = vrot.slane %v100, 4
    %v806 = vsel %vm253, %v805, %v804
    %807 = vrot.lane.b32.xlu0 %v806, 96
    %v808 = vpop.permute.xlu0 %807
    %v810 = vsel %vm260, %v803, 0
    %812 = vmatprep.subr.mxu0 0.0
    %813 = vmatpush1.msra.mxu0 0.0
    %814 = vmatprep.subr.mxu0 0.0
    %815 = vmatpush1.msra.mxu0 0.0
    %816 = vmatprep.subr.mxu0 0.0
    %817 = vmatpush1.msra.mxu0 0.0
    %818 = vmatprep.subr.mxu0 0.0
    %819 = vmatpush1.msra.mxu0 0.0
    %820 = vmatprep.subr.mxu0 0.0
    %821 = vmatpush1.msra.mxu0 0.0
    %822 = vmatprep.subr.mxu0 0.0
    %823 = vmatpush1.msra.mxu0 0.0
    %824 = vmatprep.subr.mxu0 0.0
    %825 = vmatpush1.msra.mxu0 0.0
    %826 = vmatprep.subr.mxu0 0.0
    %827 = vmatpush1.msra.mxu0 0.0
    %828 = vmatprep.subr.mxu0 0.0
    %829 = vmatpush1.msra.mxu0 0.0
    %830 = vmatprep.subr.mxu0 0.0
    %831 = vmatpush1.msra.mxu0 0.0
    %832 = vmatprep.subr.mxu0 0.0
    %833 = vmatpush1.msra.mxu0 0.0
    %834 = vmatprep.subr.mxu0 0.0
    %835 = vmatpush1.msra.mxu0 0.0
    %836 = vmatprep.subr.mxu0 0.0
    %837 = vmatpush1.msra.mxu0 0.0
    %838 = vmatprep.subr.mxu0 0.0
    %839 = vmatpush1.msra.mxu0 0.0
    %840 = vmatprep.subr.mxu0 0.0
    %841 = vmatpush1.msra.mxu0 0.0
    %842 = vmatprep.subr.mxu0 0.0
    %843 = vmatpush1.msra.mxu0 %v800
    %844 = vmatprep.subr.mxu0 0.0
    %845 = vmatpush2.msra.mxu0 0.0
    %846 = vmatprep.subr.mxu0 0.0
    %847 = vmatpush2.msra.mxu0 0.0
    %848 = vmatprep.subr.mxu0 0.0
    %849 = vmatpush2.msra.mxu0 0.0
    %850 = vmatprep.subr.mxu0 0.0
    %851 = vmatpush2.msra.mxu0 0.0
    %852 = vmatprep.subr.mxu0 0.0
    %853 = vmatpush2.msra.mxu0 0.0
    %854 = vmatprep.subr.mxu0 0.0
    %855 = vmatpush2.msra.mxu0 0.0
    %856 = vmatprep.subr.mxu0 0.0
    %857 = vmatpush2.msra.mxu0 0.0
    %858 = vmatprep.subr.mxu0 0.0
    %859 = vmatpush2.msra.mxu0 0.0
    %860 = vmatprep.subr.mxu0 0.0
    %861 = vmatpush2.msra.mxu0 0.0
    %862 = vmatprep.subr.mxu0 0.0
    %863 = vmatpush2.msra.mxu0 0.0
    %864 = vmatprep.subr.mxu0 0.0
    %865 = vmatpush2.msra.mxu0 0.0
    %866 = vmatprep.subr.mxu0 0.0
    %867 = vmatpush2.msra.mxu0 0.0
    %868 = vmatprep.subr.mxu0 0.0
    %869 = vmatpush2.msra.mxu0 0.0
    %870 = vmatprep.subr.mxu0 0.0
    %871 = vmatpush2.msra.mxu0 0.0
    %872 = vmatprep.subr.mxu0 0.0
    %873 = vmatpush2.msra.mxu0 0.0
    %874 = vmatprep.subr.mxu0 0.0
    %875 = vmatpush2.msra.mxu0 0.0
    %876 = vmatprep.mubr.f32.mxu0 0.0
    %877 = vmatmul.mubr.f32.gmra.mxu0 %v810
    %v878 = vpop.f32.mrf.mxu0
    %v879 = vadd.f32 %v808, %v878
    %v880 = vpop.f32.mrf.mxu0
    %881 = vdwg.mxu0
    %v884 = vunpack.c.l.s4 1966171168
    %v885 = vunpack.c.0.s8 %v884
    %v886 = vlaneseq
    %v887 = vshrl.u32 %v886, 7
    %v888 = vsub.s32 %v885, %v887
    %v889 = vrot.slane %v879, %v888
    %v890 = vcombine.high %v889, %v889
    %v892 = vunpack.c.l.s4 1966171168
    %v893 = vunpack.c.0.s8 %v892
    %v894 = vlaneseq
    %v895 = vshrl.u32 %v894, 7
    %v896 = vsub.s32 %v893, %v895
    %v897 = vrot.slane %v889, %v896
    %v899 = vunpack.c.l.s4 1966171168
    %v900 = vunpack.c.0.s8 %v899
    %v901 = vlaneseq
    %v902 = vshrl.u32 %v901, 7
    %v903 = vsub.s32 %v900, %v902
    %v904 = vrot.slane %v890, %v903
    %907 = vst.msk [vmem:[#allocation2 + $0x5] sm:$0x1] %vm358, %v897
    %908 = vst.msk [vmem:[#allocation2 + $0xd] sm:$0x1] %vm358, %v904
    %s909 = scalar_lea.vmem %s1, 48
    %v910 = vld [vmem:[%s909] sm:$0xff]
    %v911 = vrot.slane %v173, 6
    %v912 = vrot.slane %v246, 5
    %v913 = vsel %vm253, %v912, %v911
    %v914 = vrot.slane %v95, 6
    %v915 = vrot.slane %v100, 5
    %v916 = vsel %vm253, %v915, %v914
    %917 = vrot.lane.b32.xlu0 %v916, 96
    %v918 = vpop.permute.xlu0 %917
    %v920 = vsel %vm260, %v913, 0
    %922 = vmatprep.subr.mxu0 0.0
    %923 = vmatpush1.msra.mxu0 0.0
    %924 = vmatprep.subr.mxu0 0.0
    %925 = vmatpush1.msra.mxu0 0.0
    %926 = vmatprep.subr.mxu0 0.0
    %927 = vmatpush1.msra.mxu0 0.0
    %928 = vmatprep.subr.mxu0 0.0
    %929 = vmatpush1.msra.mxu0 0.0
    %930 = vmatprep.subr.mxu0 0.0
    %931 = vmatpush1.msra.mxu0 0.0
    %932 = vmatprep.subr.mxu0 0.0
    %933 = vmatpush1.msra.mxu0 0.0
    %934 = vmatprep.subr.mxu0 0.0
    %935 = vmatpush1.msra.mxu0 0.0
    %936 = vmatprep.subr.mxu0 0.0
    %937 = vmatpush1.msra.mxu0 0.0
    %938 = vmatprep.subr.mxu0 0.0
    %939 = vmatpush1.msra.mxu0 0.0
    %940 = vmatprep.subr.mxu0 0.0
    %941 = vmatpush1.msra.mxu0 0.0
    %942 = vmatprep.subr.mxu0 0.0
    %943 = vmatpush1.msra.mxu0 0.0
    %944 = vmatprep.subr.mxu0 0.0
    %945 = vmatpush1.msra.mxu0 0.0
    %946 = vmatprep.subr.mxu0 0.0
    %947 = vmatpush1.msra.mxu0 0.0
    %948 = vmatprep.subr.mxu0 0.0
    %949 = vmatpush1.msra.mxu0 0.0
    %950 = vmatprep.subr.mxu0 0.0
    %951 = vmatpush1.msra.mxu0 0.0
    %952 = vmatprep.subr.mxu0 0.0
    %953 = vmatpush1.msra.mxu0 %v910
    %954 = vmatprep.subr.mxu0 0.0
    %955 = vmatpush2.msra.mxu0 0.0
    %956 = vmatprep.subr.mxu0 0.0
    %957 = vmatpush2.msra.mxu0 0.0
    %958 = vmatprep.subr.mxu0 0.0
    %959 = vmatpush2.msra.mxu0 0.0
    %960 = vmatprep.subr.mxu0 0.0
    %961 = vmatpush2.msra.mxu0 0.0
    %962 = vmatprep.subr.mxu0 0.0
    %963 = vmatpush2.msra.mxu0 0.0
    %964 = vmatprep.subr.mxu0 0.0
    %965 = vmatpush2.msra.mxu0 0.0
    %966 = vmatprep.subr.mxu0 0.0
    %967 = vmatpush2.msra.mxu0 0.0
    %968 = vmatprep.subr.mxu0 0.0
    %969 = vmatpush2.msra.mxu0 0.0
    %970 = vmatprep.subr.mxu0 0.0
    %971 = vmatpush2.msra.mxu0 0.0
    %972 = vmatprep.subr.mxu0 0.0
    %973 = vmatpush2.msra.mxu0 0.0
    %974 = vmatprep.subr.mxu0 0.0
    %975 = vmatpush2.msra.mxu0 0.0
    %976 = vmatprep.subr.mxu0 0.0
    %977 = vmatpush2.msra.mxu0 0.0
    %978 = vmatprep.subr.mxu0 0.0
    %979 = vmatpush2.msra.mxu0 0.0
    %980 = vmatprep.subr.mxu0 0.0
    %981 = vmatpush2.msra.mxu0 0.0
    %982 = vmatprep.subr.mxu0 0.0
    %983 = vmatpush2.msra.mxu0 0.0
    %984 = vmatprep.subr.mxu0 0.0
    %985 = vmatpush2.msra.mxu0 0.0
    %986 = vmatprep.mubr.f32.mxu0 0.0
    %987 = vmatmul.mubr.f32.gmra.mxu0 %v920
    %v988 = vpop.f32.mrf.mxu0
    %v989 = vadd.f32 %v918, %v988
    %v990 = vpop.f32.mrf.mxu0
    %991 = vdwg.mxu0
    %v994 = vunpack.c.l.s4 1966171168
    %v995 = vunpack.c.0.s8 %v994
    %v996 = vlaneseq
    %v997 = vshrl.u32 %v996, 7
    %v998 = vsub.s32 %v995, %v997
    %v999 = vrot.slane %v989, %v998
    %v1000 = vcombine.high %v999, %v999
    %v1002 = vunpack.c.l.s4 1966171168
    %v1003 = vunpack.c.0.s8 %v1002
    %v1004 = vlaneseq
    %v1005 = vshrl.u32 %v1004, 7
    %v1006 = vsub.s32 %v1003, %v1005
    %v1007 = vrot.slane %v999, %v1006
    %v1009 = vunpack.c.l.s4 1966171168
    %v1010 = vunpack.c.0.s8 %v1009
    %v1011 = vlaneseq
    %v1012 = vshrl.u32 %v1011, 7
    %v1013 = vsub.s32 %v1010, %v1012
    %v1014 = vrot.slane %v1000, %v1013
    %1017 = vst.msk [vmem:[#allocation2 + $0x6] sm:$0x1] %vm358, %v1007
    %1018 = vst.msk [vmem:[#allocation2 + $0xe] sm:$0x1] %vm358, %v1014
    %s1019 = scalar_lea.vmem %s1, 56
    %v1020 = vld [vmem:[%s1019] sm:$0xff]
    %v1021 = vrot.slane %v173, 7
    %v1022 = vrot.slane %v246, 6
    %v1023 = vsel %vm253, %v1022, %v1021
    %v1024 = vrot.slane %v95, 7
    %v1025 = vrot.slane %v100, 6
    %v1026 = vsel %vm253, %v1025, %v1024
    %1027 = vrot.lane.b32.xlu0 %v1026, 96
    %v1028 = vpop.permute.xlu0 %1027
    %v1030 = vsel %vm260, %v1023, 0
    %1032 = vmatprep.subr.mxu0 0.0
    %1033 = vmatpush1.msra.mxu0 0.0
    %1034 = vmatprep.subr.mxu0 0.0
    %1035 = vmatpush1.msra.mxu0 0.0
    %1036 = vmatprep.subr.mxu0 0.0
    %1037 = vmatpush1.msra.mxu0 0.0
    %1038 = vmatprep.subr.mxu0 0.0
    %1039 = vmatpush1.msra.mxu0 0.0
    %1040 = vmatprep.subr.mxu0 0.0
    %1041 = vmatpush1.msra.mxu0 0.0
    %1042 = vmatprep.subr.mxu0 0.0
    %1043 = vmatpush1.msra.mxu0 0.0
    %1044 = vmatprep.subr.mxu0 0.0
    %1045 = vmatpush1.msra.mxu0 0.0
    %1046 = vmatprep.subr.mxu0 0.0
    %1047 = vmatpush1.msra.mxu0 0.0
    %1048 = vmatprep.subr.mxu0 0.0
    %1049 = vmatpush1.msra.mxu0 0.0
    %1050 = vmatprep.subr.mxu0 0.0
    %1051 = vmatpush1.msra.mxu0 0.0
    %1052 = vmatprep.subr.mxu0 0.0
    %1053 = vmatpush1.msra.mxu0 0.0
    %1054 = vmatprep.subr.mxu0 0.0
    %1055 = vmatpush1.msra.mxu0 0.0
    %1056 = vmatprep.subr.mxu0 0.0
    %1057 = vmatpush1.msra.mxu0 0.0
    %1058 = vmatprep.subr.mxu0 0.0
    %1059 = vmatpush1.msra.mxu0 0.0
    %1060 = vmatprep.subr.mxu0 0.0
    %1061 = vmatpush1.msra.mxu0 0.0
    %1062 = vmatprep.subr.mxu0 0.0
    %1063 = vmatpush1.msra.mxu0 %v1020
    %1064 = vmatprep.subr.mxu0 0.0
    %1065 = vmatpush2.msra.mxu0 0.0
    %1066 = vmatprep.subr.mxu0 0.0
    %1067 = vmatpush2.msra.mxu0 0.0
    %1068 = vmatprep.subr.mxu0 0.0
    %1069 = vmatpush2.msra.mxu0 0.0
    %1070 = vmatprep.subr.mxu0 0.0
    %1071 = vmatpush2.msra.mxu0 0.0
    %1072 = vmatprep.subr.mxu0 0.0
    %1073 = vmatpush2.msra.mxu0 0.0
    %1074 = vmatprep.subr.mxu0 0.0
    %1075 = vmatpush2.msra.mxu0 0.0
    %1076 = vmatprep.subr.mxu0 0.0
    %1077 = vmatpush2.msra.mxu0 0.0
    %1078 = vmatprep.subr.mxu0 0.0
    %1079 = vmatpush2.msra.mxu0 0.0
    %1080 = vmatprep.subr.mxu0 0.0
    %1081 = vmatpush2.msra.mxu0 0.0
    %1082 = vmatprep.subr.mxu0 0.0
    %1083 = vmatpush2.msra.mxu0 0.0
    %1084 = vmatprep.subr.mxu0 0.0
    %1085 = vmatpush2.msra.mxu0 0.0
    %1086 = vmatprep.subr.mxu0 0.0
    %1087 = vmatpush2.msra.mxu0 0.0
    %1088 = vmatprep.subr.mxu0 0.0
    %1089 = vmatpush2.msra.mxu0 0.0
    %1090 = vmatprep.subr.mxu0 0.0
    %1091 = vmatpush2.msra.mxu0 0.0
    %1092 = vmatprep.subr.mxu0 0.0
    %1093 = vmatpush2.msra.mxu0 0.0
    %1094 = vmatprep.subr.mxu0 0.0
    %1095 = vmatpush2.msra.mxu0 0.0
    %1096 = vmatprep.mubr.f32.mxu0 0.0
    %1097 = vmatmul.mubr.f32.gmra.mxu0 %v1030
    %v1098 = vpop.f32.mrf.mxu0
    %v1099 = vadd.f32 %v1028, %v1098
    %v1100 = vpop.f32.mrf.mxu0
    %1101 = vdwg.mxu0
    %v1104 = vunpack.c.l.s4 1966171168
    %v1105 = vunpack.c.0.s8 %v1104
    %v1106 = vlaneseq
    %v1107 = vshrl.u32 %v1106, 7
    %v1108 = vsub.s32 %v1105, %v1107
    %v1109 = vrot.slane %v1099, %v1108
    %v1110 = vcombine.high %v1109, %v1109
    %v1112 = vunpack.c.l.s4 1966171168
    %v1113 = vunpack.c.0.s8 %v1112
    %v1114 = vlaneseq
    %v1115 = vshrl.u32 %v1114, 7
    %v1116 = vsub.s32 %v1113, %v1115
    %v1117 = vrot.slane %v1109, %v1116
    %v1119 = vunpack.c.l.s4 1966171168
    %v1120 = vunpack.c.0.s8 %v1119
    %v1121 = vlaneseq
    %v1122 = vshrl.u32 %v1121, 7
    %v1123 = vsub.s32 %v1120, %v1122
    %v1124 = vrot.slane %v1110, %v1123
    %1127 = vst.msk [vmem:[#allocation2 + $0x7] sm:$0x1] %vm358, %v1117
    %1128 = vst.msk [vmem:[#allocation2 + $0xf] sm:$0x1] %vm358, %v1124
    // Predicated region
    $region14: #{sam3a.1} parent=1 // pred_check
      _
    $region15: #{sam3a.1} parent=1 // pred_check_branch
      %1130 = sbr.rel (0) target = $region17
    $region16: #{sam3a.1} parent=1 // pred_region
      %s1132 = ssub.s32 256, 256
      %1133 = vsyncadd [#allocation3], %s1132
      %s1134 = sshll.u32 [#allocation2], 4
      %s1135 = int_to_ptr.vmem [resolvable:$true] %s1134
      %1140 = dma.vmem_to_hbm [thread:$0]  %s1135, 256, %s3, [#allocation3], 128, 128, 8
    $region17: #{sam3a.1} parent=1 // pred_fallthru
      _
    // Predicated region
    $region18: #{sam3a.1} parent=1 // pred_check
      _
    $region19: #{sam3a.1} parent=1 // pred_check_branch
      %1142 = sbr.rel (0) target = $region21
    $region20: #{sam3a.1} parent=1 // pred_region
      %1143 = dma.done [#allocation3], 256
    $region21: #{sam3a.1} parent=1 // pred_fallthru
      _
    %1144 = vsyncpa [#allocation3], 1

</llo_original>
